<compile_context>
chip_gen: v5e
topology: v5e:2x2
jax: 0.10.0
libtpu: 0.0.40
codegen_flags: <defaults>
</compile_context>

<pallas_src>
import functools

import jax
import jax.numpy as jnp
from jax.experimental import pallas as pl
from jax.experimental.pallas import tpu as pltpu

NUM_CLASSES = 5
C_PAD = 128                       # lane-dense class width (5 padded to a full lane dim)
MAX_TILE_B = 1024                 # batch tile upper bound (multiple of 8)
_VMEM_BUDGET = 24 * 1024 * 1024   # double-buffered tile budget, v7x-safe


def _round_up(n, m):
    return ((n + m - 1) // m) * m


def _choose_tile_b(batch, feat):
    # 2x double-buffering of the (TILE_B, feat) x tile + (TILE_B, C_PAD) output tile, f32.
    bytes_per_row = 2 * (feat + C_PAD) * 4
    tb = max(8, min(MAX_TILE_B, _VMEM_BUDGET // max(bytes_per_row, 1)))
    tb = max(8, (tb // 8) * 8)
    return min(tb, _round_up(batch, 8))


# ----------------------------- kernels -----------------------------------

def _linear_kernel(x_ref, w_ref, b_ref, o_ref):
    # x: (TILE_B, D), w: (D, C_PAD), b: (1, C_PAD) -> o: (TILE_B, C_PAD) lane-dense
    y = jnp.dot(x_ref[...], w_ref[...], preferred_element_type=jnp.float32)
    o_ref[...] = (y + b_ref[...]).astype(o_ref.dtype)


def _linear_ce_kernel(x_ref, w_ref, b_ref, y_ref, loss_ref, *, batch_true):
    # Fused logits + mean cross-entropy, accumulated across batch tiles.
    i = pl.program_id(0)
    tile_b = x_ref.shape[0]

    @pl.when(i == 0)
    def _():
        loss_ref[...] = jnp.zeros_like(loss_ref)

    logits = jnp.dot(x_ref[...], w_ref[...],
                     preferred_element_type=jnp.float32) + b_ref[...]   # (TILE_B, C_PAD)
    labels = y_ref[...]                                                 # (TILE_B, 1) int32

    # mask the padded class lanes out of the softmax
    cls_ids = jax.lax.broadcasted_iota(jnp.int32, logits.shape, 1)
    logits = jnp.where(cls_ids < NUM_CLASSES, logits, jnp.float32(-1e30))

    # numerically-stable log-softmax
    m = jnp.max(logits, axis=-1, keepdims=True)
    shifted = logits - m
    lse = jnp.log(jnp.sum(jnp.exp(shifted), axis=-1, keepdims=True))
    log_probs = shifted - lse                                           # (TILE_B, C_PAD)

    # gather target log-prob via one-hot (no dynamic gather in vregs)
    onehot = (cls_ids == labels).astype(jnp.float32)
    nll = -jnp.sum(log_probs * onehot, axis=-1, keepdims=True)          # (TILE_B, 1)

    # mask padded batch rows of the last tile
    row_ids = jax.lax.broadcasted_iota(jnp.int32, nll.shape, 0) + i * tile_b
    nll = jnp.where(row_ids < batch_true, nll, jnp.float32(0.0))

    loss_ref[...] += jnp.sum(nll, keepdims=True)                        # (1, 1)

    @pl.when(i == pl.num_programs(0) - 1)
    def _():
        loss_ref[...] = loss_ref[...] / jnp.float32(batch_true)         # true global mean


# ----------------------------- wrappers -----------------------------------

@jax.jit
def linear_forward(x, w_pad, b_pad):
    B, D = x.shape
    tile_b = _choose_tile_b(B, D)
    B_pad = _round_up(B, tile_b)
    if B_pad != B:
        x = jnp.pad(x, ((0, B_pad - B), (0, 0)))

    out = pl.pallas_call(
        _linear_kernel,
        out_shape=jax.ShapeDtypeStruct((B_pad, C_PAD), jnp.float32),
        grid=(B_pad // tile_b,),
        in_specs=[
            pl.BlockSpec((tile_b, D), lambda i: (i, 0)),     # x streams per tile
            pl.BlockSpec((D, C_PAD), lambda i: (0, 0)),      # w resident across grid
            pl.BlockSpec((1, C_PAD), lambda i: (0, 0)),      # b resident across grid
        ],
        out_specs=pl.BlockSpec((tile_b, C_PAD), lambda i: (i, 0)),
        compiler_params=pltpu.CompilerParams(
            dimension_semantics=("parallel",)),
    )(x, w_pad, b_pad)
    return out[:B, :NUM_CLASSES]


@jax.jit
def linear_ce_forward(x, w_pad, b_pad, y):
    B, D = x.shape
    tile_b = _choose_tile_b(B, D)
    B_pad = _round_up(B, tile_b)
    y2d = y.astype(jnp.int32).reshape(-1, 1)
    if B_pad != B:
        x = jnp.pad(x, ((0, B_pad - B), (0, 0)))
        y2d = jnp.pad(y2d, ((0, B_pad - B), (0, 0)))

    kernel = functools.partial(_linear_ce_kernel, batch_true=B)
    loss = pl.pallas_call(
        kernel,
        out_shape=jax.ShapeDtypeStruct((1, 1), jnp.float32),
        grid=(B_pad // tile_b,),
        in_specs=[
            pl.BlockSpec((tile_b, D), lambda i: (i, 0)),     # x streams per tile
            pl.BlockSpec((D, C_PAD), lambda i: (0, 0)),      # w resident
            pl.BlockSpec((1, C_PAD), lambda i: (0, 0)),      # b resident
            pl.BlockSpec((tile_b, 1), lambda i: (i, 0)),     # labels per tile
        ],
        # constant index_map -> (1,1) loss block stays resident = on-chip accumulator
        out_specs=pl.BlockSpec((1, 1), lambda i: (0, 0)),
        compiler_params=pltpu.CompilerParams(
            dimension_semantics=("arbitrary",)),             # reduction over batch tiles
    )(x, w_pad, b_pad, y2d)
    return loss[0, 0]


class MultiClassficationModel:
    """JAX/Pallas port of the PyTorch module (forward only)."""

    def __init__(self, input_size, key=jax.random.PRNGKey(0)):
        kw, kb = jax.random.split(key)
        bound = 1.0 / float(input_size) ** 0.5   # nn.Linear default init range
        # logical params (input_size, 5); stored as x @ W layout
        self.w = jax.random.uniform(kw, (input_size, NUM_CLASSES),
                                    jnp.float32, -bound, bound)
        self.b = jax.random.uniform(kb, (1, NUM_CLASSES),
                                    jnp.float32, -bound, bound)
        # lane-dense zero-padded copies used by the kernels
        self.w_pad = jnp.pad(self.w, ((0, 0), (0, C_PAD - NUM_CLASSES)))
        self.b_pad = jnp.pad(self.b, ((0, 0), (0, C_PAD - NUM_CLASSES)))

    def __call__(self, x, y=None):
        if y is not None:
            return linear_ce_forward(x, self.w_pad, self.b_pad, y)
        return linear_forward(x, self.w_pad, self.b_pad)


# ------------------------------- main --------------------------------------

if __name__ == "__main__":
    key = jax.random.PRNGKey(0)
    kx, ky, kp, kx2, ky2 = jax.random.split(key, 5)

    # --- small case (matches the toy module sizes) ---
    batch, input_size = 8, 32
    x = jax.random.normal(kx, (batch, input_size), jnp.float32)
    y = jax.random.randint(ky, (batch,), 0, NUM_CLASSES, jnp.int32)
    model = MultiClassficationModel(input_size, key=kp)

    logits = jax.block_until_ready(model(x))
    assert logits.shape == (batch, NUM_CLASSES)
    loss = jax.block_until_ready(model(x, y))
    assert loss.shape == ()

    ref_logits = x @ model.w + model.b
    ref_lp = jax.nn.log_softmax(ref_logits, axis=-1)
    ref_loss = -jnp.mean(ref_lp[jnp.arange(batch), y])
    assert jnp.allclose(logits, ref_logits, atol=1e-5, rtol=1e-5)
    assert jnp.allclose(loss, ref_loss, atol=1e-5, rtol=1e-5)

    # --- larger case: exercises multi-tile grid + batch-remainder masking ---
    batch2, input_size2 = 2000, 64
    x2 = jax.random.normal(kx2, (batch2, input_size2), jnp.float32)
    y2 = jax.random.randint(ky2, (batch2,), 0, NUM_CLASSES, jnp.int32)
    model2 = MultiClassficationModel(input_size2, key=kp)

    logits2 = jax.block_until_ready(model2(x2))
    loss2 = jax.block_until_ready(model2(x2, y2))
    ref_logits2 = x2 @ model2.w + model2.b
    ref_lp2 = jax.nn.log_softmax(ref_logits2, axis=-1)
    ref_loss2 = -jnp.mean(ref_lp2[jnp.arange(batch2), y2])
    assert logits2.shape == (batch2, NUM_CLASSES)
    assert jnp.allclose(logits2, ref_logits2, atol=1e-4, rtol=1e-4)
    assert jnp.allclose(loss2, ref_loss2, atol=1e-4, rtol=1e-4)

    print("KERNEL_OK")
</pallas_src>

<mosaic_0001>
module attributes {stable_mosaic.version = 11 : i64} {
  func.func @_linear_kernel(%arg0: i32, %arg1: memref<8x32xf32, #tpu.memory_space<vmem>>, %arg2: memref<32x128xf32, #tpu.memory_space<vmem>>, %arg3: memref<1x128xf32, #tpu.memory_space<vmem>>, %arg4: memref<8x128xf32, #tpu.memory_space<vmem>>) attributes {dimension_semantics = [#tpu.dimension_semantics<parallel>], iteration_bounds = array<i64: 1>, scalar_prefetch = 0 : i64, scratch_operands = 0 : i64, tpu.core_type = #tpu.core_type<tc>, window_params = [{transform_indices = @transform_0, window_bounds = array<i64: 8, 32>}, {pipeline_mode = #tpu.pipeline_mode<synchronous>, transform_indices = @transform_1, window_bounds = array<i64: 32, 128>}, {pipeline_mode = #tpu.pipeline_mode<synchronous>, transform_indices = @transform_2, window_bounds = array<i64: 1, 128>}, {transform_indices = @transform_3, window_bounds = array<i64: 8, 128>}]} {
    %c0 = arith.constant 0 : index
    %c0_0 = arith.constant 0 : index
    %0 = vector.load %arg1[%c0, %c0_0] : memref<8x32xf32, #tpu.memory_space<vmem>>, vector<8x32xf32>
    %c0_1 = arith.constant 0 : index
    %c0_2 = arith.constant 0 : index
    %1 = vector.load %arg2[%c0_1, %c0_2] : memref<32x128xf32, #tpu.memory_space<vmem>>, vector<32x128xf32>
    %cst = arith.constant dense<0.000000e+00> : vector<8x128xf32>
    %2 = tpu.matmul %0, %1, %cst {dimension_numbers = #tpu.dot_dimension_numbers<[1], [0], [0], [1], [0, 0, 1, 1], [], []>} : vector<8x32xf32>, vector<32x128xf32>, vector<8x128xf32> -> vector<8x128xf32>
    %c0_3 = arith.constant 0 : index
    %c0_4 = arith.constant 0 : index
    %3 = vector.load %arg3[%c0_3, %c0_4] : memref<1x128xf32, #tpu.memory_space<vmem>>, vector<1x128xf32>
    %4 = vector.broadcast %3 : vector<1x128xf32> to vector<8x128xf32>
    %5 = arith.addf %2, %4 : vector<8x128xf32>
    %c0_5 = arith.constant 0 : index
    %c0_6 = arith.constant 0 : index
    %6 = vector.load %arg4[%c0_5, %c0_6] : memref<8x128xf32, #tpu.memory_space<vmem>>, vector<8x128xf32>
    tpu.vector_store %arg4[%c0_5, %c0_6], %5 {strides = array<i32>} : memref<8x128xf32, #tpu.memory_space<vmem>>, vector<8x128xf32>,
    return
  }
  func.func @transform_0(%arg0: i32) -> (i32, i32) {
    %c0_i32 = arith.constant 0 : i32
    %c0_i32_0 = arith.constant 0 : i32
    return %arg0, %c0_i32 : i32, i32
  }
  func.func @transform_1(%arg0: i32) -> (i32, i32) {
    %c0_i32 = arith.constant 0 : i32
    %c0_i32_0 = arith.constant 0 : i32
    %c0_i32_1 = arith.constant 0 : i32
    return %c0_i32, %c0_i32_0 : i32, i32
  }
  func.func @transform_2(%arg0: i32) -> (i32, i32) {
    %c0_i32 = arith.constant 0 : i32
    %c0_i32_0 = arith.constant 0 : i32
    %c0_i32_1 = arith.constant 0 : i32
    return %c0_i32, %c0_i32_0 : i32, i32
  }
  func.func @transform_3(%arg0: i32) -> (i32, i32) {
    %c0_i32 = arith.constant 0 : i32
    %c0_i32_0 = arith.constant 0 : i32
    return %arg0, %c0_i32 : i32, i32
  }
}

</mosaic_0001>

<llo_original>
// kernel: linear_forward.1
$region0: #{linear_forward.1}
  #allocation0 [shape = 'u32[]', space=smem, size = 0x4, offset = 0x4, fixed_abs, tag = 'smem constant byte address 0x4 - core index']
  #allocation1 [shape = 'u32[72,128]{1,0:T(1,128)}', space=vmem, size = 0x9000, scoped, tag = 'internal scratch']
  %s0 = inlined_call_operand.hbm [shape: f32[8,32], index: 0, kind: input, shape index: {}]
  %s1 = inlined_call_operand.hbm [shape: f32[32,128], index: 1, kind: input, shape index: {}]
  %s2 = inlined_call_operand.vmem [shape: f32[1,128], index: 2, kind: input, shape index: {}]
  %s3 = inlined_call_operand.hbm [shape: f32[8,128], index: 3, kind: output, shape index: {}]
  %s4 = sld [smem:[#allocation0]]
  $region30: #{linear_forward.1} parent=0
    _
  %s6 = ssub.s32 1, %s4
  %s7 = scalar_select 0, %s6, %s4
  $region1: #{linear_forward.1} parent=0
    #allocation2 [shape = 'u8[4096]{0}', space=vmem, size = 0x1000, scoped, tag = 'input window, operand 0, single buffered']
    #allocation3 [shape = 's32[1]{0}', space=sflag, size = 0x4, scoped, tag = 'scoped memory for linear_forward.1']
    #allocation4 [shape = 's32[1]{0}', space=sflag, size = 0x4, scoped, tag = 'scoped memory for linear_forward.1']
    #allocation5 [shape = 'u8[16384]{0}', space=vmem, size = 0x4000, scoped, tag = 'input window, operand 1, single buffered']
    #allocation6 [shape = 's32[1]{0}', space=sflag, size = 0x4, scoped, tag = 'scoped memory for linear_forward.1']
    #allocation7 [shape = 'u8[4096]{0}', space=vmem, size = 0x1000, scoped, tag = 'output window, operand 0, single buffered']
    %8 = vsyncpa [#allocation3], 0
    %9 = vsyncpa [#allocation6], 0
    %10 = vsyncpa [#allocation4], 0
    // Predicated region
    $region2: #{linear_forward.1} parent=1 // pred_check
      _
    $region3: #{linear_forward.1} parent=1 // pred_check_branch
      %12 = sbr.rel (0) target = $region5
    $region4: #{linear_forward.1} parent=1 // pred_region
      %14 = vsyncadd [#allocation3], 0
      %s16 = sshll.u32 %s0, 4
      %s17 = int_to_ptr.hbm [resolvable:$true] %s16
      %s18 = sshll.u32 [#allocation2], 4
      %s19 = int_to_ptr.vmem [resolvable:$true] %s18
      %21 = dma.hbm_to_vmem [thread:$0]  %s17, 128, %s19, [#allocation3]
    $region5: #{linear_forward.1} parent=1 // pred_fallthru
      _
    // Predicated region
    $region6: #{linear_forward.1} parent=1 // pred_check
      _
    $region7: #{linear_forward.1} parent=1 // pred_check_branch
      %23 = sbr.rel (0) target = $region9
    $region8: #{linear_forward.1} parent=1 // pred_region
      %25 = vsyncadd [#allocation6], 0
      %s26 = sshll.u32 %s1, 4
      %s27 = int_to_ptr.hbm [resolvable:$true] %s26
      %s28 = sshll.u32 [#allocation5], 4
      %s29 = int_to_ptr.vmem [resolvable:$true] %s28
      %34 = dma.hbm_to_vmem [thread:$0]  %s27, 512, %s29, [#allocation6], 128, 128, 8
    $region9: #{linear_forward.1} parent=1 // pred_fallthru
      _
    // Predicated region
    $region10: #{linear_forward.1} parent=1 // pred_check
      _
    $region11: #{linear_forward.1} parent=1 // pred_check_branch
      %36 = sbr.rel (0) target = $region13
    $region12: #{linear_forward.1} parent=1 // pred_region
      _
    $region13: #{linear_forward.1} parent=1 // pred_fallthru
      _
    // Predicated region
    $region14: #{linear_forward.1} parent=1 // pred_check
      _
    $region15: #{linear_forward.1} parent=1 // pred_check_branch
      %38 = sbr.rel (0) target = $region17
    $region16: #{linear_forward.1} parent=1 // pred_region
      %40 = dma.done [#allocation3], 128
    $region17: #{linear_forward.1} parent=1 // pred_fallthru
      _
    // Predicated region
    $region18: #{linear_forward.1} parent=1 // pred_check
      _
    $region19: #{linear_forward.1} parent=1 // pred_check_branch
      %42 = sbr.rel (0) target = $region21
    $region20: #{linear_forward.1} parent=1 // pred_region
      %44 = dma.done [#allocation6], 512
    $region21: #{linear_forward.1} parent=1 // pred_fallthru
      _
    %v45 = vld [vmem:[#allocation2] sm:$0xff]
    %v46 = vld [vmem:[#allocation5] sm:$0xff]
    %v47 = vld [vmem:[#allocation5 + $0x8] sm:$0xff]
    %v48 = vld [vmem:[#allocation5 + $0x10] sm:$0xff]
    %v49 = vld [vmem:[#allocation5 + $0x18] sm:$0xff]
    %v50 = vld [vmem:[%s2] sm:$0x1]
    %v52 = vperm.slane %v50, 0
    %vm54 = vcmask 261120
    %v56 = vsel %vm54, %v45, 0
    %58 = vmatpush.msra.mxu0 0.0
    %59 = vmatpush.msra.mxu0 0.0
    %60 = vmatpush.msra.mxu0 0.0
    %61 = vmatpush.msra.mxu0 0.0
    %62 = vmatpush.msra.mxu0 0.0
    %63 = vmatpush.msra.mxu0 0.0
    %64 = vmatpush.msra.mxu0 0.0
    %65 = vmatpush.msra.mxu0 0.0
    %66 = vmatpush.msra.mxu0 0.0
    %67 = vmatpush.msra.mxu0 0.0
    %68 = vmatpush.msra.mxu0 0.0
    %69 = vmatpush.msra.mxu0 0.0
    %70 = vmatpush.msra.mxu0 %v49
    %71 = vmatpush.msra.mxu0 %v48
    %72 = vmatpush.msra.mxu0 %v47
    %73 = vmatpush.msra.mxu0 %v46
    %74 = vmatmul.f32.gmra.mxu0 %v56
    %v75 = vpop.f32.mrf.mxu0
    %v76 = vadd.f32 %v52, %v75
    %77 = vdwg.mxu0
    %78 = vst [vmem:[#allocation7] sm:$0xff] %v76
    // Predicated region
    $region22: #{linear_forward.1} parent=1 // pred_check
      _
    $region23: #{linear_forward.1} parent=1 // pred_check_branch
      %80 = sbr.rel (0) target = $region25
    $region24: #{linear_forward.1} parent=1 // pred_region
      %82 = vsyncadd [#allocation4], 0
      %s84 = sshll.u32 [#allocation7], 4
      %s85 = int_to_ptr.vmem [resolvable:$true] %s84
      %s86 = sshll.u32 %s3, 4
      %s87 = int_to_ptr.hbm [resolvable:$true] %s86
      %89 = dma.vmem_to_hbm [thread:$0]  %s85, 128, %s87, [#allocation4]
    $region25: #{linear_forward.1} parent=1 // pred_fallthru
      _
    // Predicated region
    $region26: #{linear_forward.1} parent=1 // pred_check
      _
    $region27: #{linear_forward.1} parent=1 // pred_check_branch
      %91 = sbr.rel (0) target = $region29
    $region28: #{linear_forward.1} parent=1 // pred_region
      %93 = dma.done [#allocation4], 128
    $region29: #{linear_forward.1} parent=1 // pred_fallthru
      _
    %94 = vsyncpa [#allocation3], 1
    %95 = vsyncpa [#allocation6], 1
    %96 = vsyncpa [#allocation4], 1

</llo_original>
